<compile_context>
chip_gen: v7x
topology: tpu7x:2x2x1
jax: 0.10.0
libtpu: 0.0.40
codegen_flags: <defaults>
</compile_context>

<pallas_src>
import jax
import jax.numpy as jnp
from jax.experimental import pallas as pl
from jax.experimental.pallas import tpu as pltpu


def _round_up(x, m):
    return ((x + m - 1) // m) * m


def _linear_softplus_kernel(x_ref, w_ref, b_ref, o_ref):
    # z = x_tile @ W_t + b ; W_t is (S, H), f32 MXU accumulation.
    z = jnp.dot(x_ref[...], w_ref[...], preferred_element_type=jnp.float32)
    z = z + b_ref[...]                       # (1, H) broadcasts over rows
    # PyTorch F.softplus(beta=1, threshold=20): x if x > 20 else log(1+exp(x))
    safe = jnp.minimum(z, 20.0)
    o_ref[...] = jnp.where(z > 20.0, z, jnp.log1p(jnp.exp(safe)))


def prepare_params(w, b):
    """One-time param prep: transpose PyTorch-layout (H, S) -> (S, H)."""
    H, S = w.shape
    w_t = jnp.asarray(w.T, jnp.float32)          # (S, H)
    b_p = jnp.asarray(b, jnp.float32).reshape(1, H)
    return w_t, b_p, H


def _choose_tm(B):
    """Batch tile size.

    - B <= 8: one block equal to the full batch (legal: block dim == array dim).
    - Otherwise: split into >= 2 balanced tiles (keeps v7x's second TensorCore
      busy via the "parallel" grid axis), rounded to a multiple of 8, capped at
      1024 rows so the per-tile VMEM footprint stays small on every generation.
    """
    if B <= 8:
        return B
    tm = _round_up(pl.cdiv(B, 2), 8)
    return min(tm, 1024)


def linear_softplus(x, w_t, b_p, hidden_dim):
    """x: (B, S) f32; w_t: (S, H) f32; b_p: (1, H) f32 -> (B, H) f32."""
    B, S = x.shape
    S2, H = w_t.shape
    assert S == S2 and H == hidden_dim

    TM = _choose_tm(B)
    grid = (pl.cdiv(B, TM),)                     # ragged last tile handled by Pallas

    out = pl.pallas_call(
        _linear_softplus_kernel,
        out_shape=jax.ShapeDtypeStruct((B, H), jnp.float32),
        grid_spec=pl.GridSpec(
            grid=grid,
            in_specs=[
                pl.BlockSpec((TM, S), lambda i: (i, 0)),   # streamed batch tile
                pl.BlockSpec((S, H), lambda i: (0, 0)),    # weight: VMEM-resident
                pl.BlockSpec((1, H), lambda i: (0, 0)),    # bias: VMEM-resident
            ],
            out_specs=pl.BlockSpec((TM, H), lambda i: (i, 0)),
        ),
        compiler_params=pltpu.CompilerParams(
            dimension_semantics=("parallel",)),            # v7x: shard over 2 TCs
    )(x, w_t, b_p)
    return out


def init_network_params(key, state_dim, hidden_dim):
    """Deterministic init mimicking nn.Linear default (U[-1/sqrt(fan_in), +])."""
    k_w, k_b = jax.random.split(key)
    bound = 1.0 / jnp.sqrt(jnp.float32(state_dim))
    w = jax.random.uniform(k_w, (hidden_dim, state_dim), jnp.float32,
                           minval=-bound, maxval=bound)    # PyTorch layout (out, in)
    b = jax.random.uniform(k_b, (hidden_dim,), jnp.float32,
                           minval=-bound, maxval=bound)
    return w, b


def _softplus_ref(z):
    return jnp.where(z > 20.0, z, jnp.log1p(jnp.exp(jnp.minimum(z, 20.0))))


if __name__ == "__main__":
    key = jax.random.PRNGKey(0)
    k_x, k_p, k_x2 = jax.random.split(key, 3)

    batch, state_dim, hidden_dim = 8, 16, 32
    x = jax.random.normal(k_x, (batch, state_dim), jnp.float32)
    w, b = init_network_params(k_p, state_dim, hidden_dim)

    # One-time param prep (done at "init", not per forward call).
    w_t, b_p, H = prepare_params(w, b)

    out = jax.block_until_ready(linear_softplus(x, w_t, b_p, H))
    ref = _softplus_ref(x @ w.T + b)
    assert out.shape == (batch, hidden_dim)
    assert jnp.allclose(out, ref, atol=1e-5, rtol=1e-5)

    # Second check: larger, non-multiple-of-8 batch exercises the 2-tile grid
    # with a ragged last block (no wrapper-side padding, no post-slice).
    batch2 = 600
    x2 = jax.random.normal(k_x2, (batch2, state_dim), jnp.float32)
    out2 = jax.block_until_ready(linear_softplus(x2, w_t, b_p, H))
    ref2 = _softplus_ref(x2 @ w.T + b)
    assert out2.shape == (batch2, hidden_dim)
    assert jnp.allclose(out2, ref2, atol=1e-5, rtol=1e-5)

    print("KERNEL_OK")
</pallas_src>

<mosaic_0001>
module attributes {stable_mosaic.version = 11 : i64} {
  func.func @_linear_softplus_kernel(%arg0: i32, %arg1: memref<8x16xf32, #tpu.memory_space<vmem>>, %arg2: memref<16x32xf32, #tpu.memory_space<vmem>>, %arg3: memref<1x32xf32, #tpu.memory_space<vmem>>, %arg4: memref<8x32xf32, #tpu.memory_space<vmem>>) attributes {dimension_semantics = [#tpu.dimension_semantics<parallel>], iteration_bounds = array<i64: 1>, scalar_prefetch = 0 : i64, scratch_operands = 0 : i64, tpu.core_type = #tpu.core_type<tc>, window_params = [{transform_indices = @transform_0, window_bounds = array<i64: 8, 16>}, {pipeline_mode = #tpu.pipeline_mode<synchronous>, transform_indices = @transform_1, window_bounds = array<i64: 16, 32>}, {pipeline_mode = #tpu.pipeline_mode<synchronous>, transform_indices = @transform_2, window_bounds = array<i64: 1, 32>}, {transform_indices = @transform_3, window_bounds = array<i64: 8, 32>}]} {
    %c0 = arith.constant 0 : index
    %c0_0 = arith.constant 0 : index
    %0 = vector.load %arg1[%c0, %c0_0] : memref<8x16xf32, #tpu.memory_space<vmem>>, vector<8x16xf32>
    %c0_1 = arith.constant 0 : index
    %c0_2 = arith.constant 0 : index
    %1 = vector.load %arg2[%c0_1, %c0_2] : memref<16x32xf32, #tpu.memory_space<vmem>>, vector<16x32xf32>
    %cst = arith.constant dense<0.000000e+00> : vector<8x32xf32>
    %2 = tpu.matmul %0, %1, %cst {dimension_numbers = #tpu.dot_dimension_numbers<[1], [0], [0], [1], [0, 0, 1, 1], [], []>} : vector<8x16xf32>, vector<16x32xf32>, vector<8x32xf32> -> vector<8x32xf32>
    %c0_3 = arith.constant 0 : index
    %c0_4 = arith.constant 0 : index
    %3 = vector.load %arg3[%c0_3, %c0_4] : memref<1x32xf32, #tpu.memory_space<vmem>>, vector<1x32xf32>
    %4 = vector.broadcast %3 : vector<1x32xf32> to vector<8x32xf32>
    %5 = arith.addf %2, %4 : vector<8x32xf32>
    %cst_5 = arith.constant 2.000000e+01 : f32
    %6 = vector.broadcast %cst_5 : f32 to vector<8x32xf32>
    %7 = arith.minimumf %5, %6 : vector<8x32xf32>
    %cst_6 = arith.constant 2.000000e+01 : f32
    %8 = vector.broadcast %cst_6 : f32 to vector<8x32xf32>
    %9 = arith.cmpf ogt, %5, %8 : vector<8x32xf32>
    %10 = math.exp %7 : vector<8x32xf32>
    %11 = math.log1p %10 : vector<8x32xf32>
    %12 = arith.select %9, %5, %11 : vector<8x32xi1>, vector<8x32xf32>
    %c0_7 = arith.constant 0 : index
    %c0_8 = arith.constant 0 : index
    %13 = vector.load %arg4[%c0_7, %c0_8] : memref<8x32xf32, #tpu.memory_space<vmem>>, vector<8x32xf32>
    tpu.vector_store %arg4[%c0_7, %c0_8], %12 {strides = array<i32>} : memref<8x32xf32, #tpu.memory_space<vmem>>, vector<8x32xf32>,
    return
  }
  func.func @transform_0(%arg0: i32) -> (i32, i32) {
    %c0_i32 = arith.constant 0 : i32
    %c0_i32_0 = arith.constant 0 : i32
    return %arg0, %c0_i32 : i32, i32
  }
  func.func @transform_1(%arg0: i32) -> (i32, i32) {
    %c0_i32 = arith.constant 0 : i32
    %c0_i32_0 = arith.constant 0 : i32
    %c0_i32_1 = arith.constant 0 : i32
    return %c0_i32, %c0_i32_0 : i32, i32
  }
  func.func @transform_2(%arg0: i32) -> (i32, i32) {
    %c0_i32 = arith.constant 0 : i32
    %c0_i32_0 = arith.constant 0 : i32
    %c0_i32_1 = arith.constant 0 : i32
    return %c0_i32, %c0_i32_0 : i32, i32
  }
  func.func @transform_3(%arg0: i32) -> (i32, i32) {
    %c0_i32 = arith.constant 0 : i32
    %c0_i32_0 = arith.constant 0 : i32
    return %arg0, %c0_i32 : i32, i32
  }
}

</mosaic_0001>

<llo_original>
// kernel: tpu_custom_call.1
$region0: #{tpu_custom_call.1}
  #allocation0 [shape = 'u32[]', space=smem, size = 0x4, offset = 0x4, fixed_abs, tag = 'smem constant byte address 0x4 - core index']
  #allocation1 [shape = 'u32[144,128]{1,0:T(1,128)}', space=vmem, size = 0x12000, scoped, tag = 'internal scratch']
  %s0 = inlined_call_operand.hbm [shape: f32[8,16], index: 0, kind: input, shape index: {}]
  %s1 = inlined_call_operand.hbm [shape: f32[16,32], index: 1, kind: input, shape index: {}]
  %s2 = inlined_call_operand.vmem [shape: f32[1,32], index: 2, kind: input, shape index: {}]
  %s3 = inlined_call_operand.hbm [shape: f32[8,32], index: 3, kind: output, shape index: {}]
  %s4 = sld [smem:[#allocation0]]
  $region30: #{tpu_custom_call.1} parent=0
    _
  %s6 = ssub.s32 1, %s4
  %s7 = scalar_select 0, %s6, %s4
  $region1: #{tpu_custom_call.1} parent=0
    #allocation2 [shape = 'u8[4096]{0}', space=vmem, size = 0x1000, scoped, tag = 'input window, operand 0, single buffered']
    #allocation3 [shape = 's32[1]{0}', space=sflag, size = 0x4, scoped, tag = 'scoped memory for tpu_custom_call.1']
    #allocation4 [shape = 's32[1]{0}', space=sflag, size = 0x4, scoped, tag = 'scoped memory for tpu_custom_call.1']
    #allocation5 [shape = 'u8[8192]{0}', space=vmem, size = 0x2000, scoped, tag = 'input window, operand 1, single buffered']
    #allocation6 [shape = 's32[1]{0}', space=sflag, size = 0x4, scoped, tag = 'scoped memory for tpu_custom_call.1']
    #allocation7 [shape = 'u8[4096]{0}', space=vmem, size = 0x1000, scoped, tag = 'output window, operand 0, single buffered']
    %8 = vsyncpa [#allocation3], 0
    %9 = vsyncpa [#allocation6], 0
    %10 = vsyncpa [#allocation4], 0
    // Predicated region
    $region2: #{tpu_custom_call.1} parent=1 // pred_check
      _
    $region3: #{tpu_custom_call.1} parent=1 // pred_check_branch
      %12 = sbr.rel (0) target = $region5
    $region4: #{tpu_custom_call.1} parent=1 // pred_region
      %s14 = ssub.s32 128, 128
      %15 = vsyncadd [#allocation3], %s14
      %s17 = sshll.u32 [#allocation2], 4
      %s18 = int_to_ptr.vmem [resolvable:$true] %s17
      %20 = dma.hbm_to_vmem [thread:$0]  %s0, 128, %s18, [#allocation3]
    $region5: #{tpu_custom_call.1} parent=1 // pred_fallthru
      _
    // Predicated region
    $region6: #{tpu_custom_call.1} parent=1 // pred_check
      _
    $region7: #{tpu_custom_call.1} parent=1 // pred_check_branch
      %22 = sbr.rel (0) target = $region9
    $region8: #{tpu_custom_call.1} parent=1 // pred_region
      %s24 = ssub.s32 256, 256
      %25 = vsyncadd [#allocation6], %s24
      %s26 = sshll.u32 [#allocation5], 4
      %s27 = int_to_ptr.vmem [resolvable:$true] %s26
      %32 = dma.hbm_to_vmem [thread:$0]  %s1, 256, %s27, [#allocation6], 128, 128, 8
    $region9: #{tpu_custom_call.1} parent=1 // pred_fallthru
      _
    // Predicated region
    $region10: #{tpu_custom_call.1} parent=1 // pred_check
      _
    $region11: #{tpu_custom_call.1} parent=1 // pred_check_branch
      %34 = sbr.rel (0) target = $region13
    $region12: #{tpu_custom_call.1} parent=1 // pred_region
      _
    $region13: #{tpu_custom_call.1} parent=1 // pred_fallthru
      _
    // Predicated region
    $region14: #{tpu_custom_call.1} parent=1 // pred_check
      _
    $region15: #{tpu_custom_call.1} parent=1 // pred_check_branch
      %36 = sbr.rel (0) target = $region17
    $region16: #{tpu_custom_call.1} parent=1 // pred_region
      %37 = dma.done [#allocation3], 128
    $region17: #{tpu_custom_call.1} parent=1 // pred_fallthru
      _
    // Predicated region
    $region18: #{tpu_custom_call.1} parent=1 // pred_check
      _
    $region19: #{tpu_custom_call.1} parent=1 // pred_check_branch
      %39 = sbr.rel (0) target = $region21
    $region20: #{tpu_custom_call.1} parent=1 // pred_region
      %40 = dma.done [#allocation6], 256
    $region21: #{tpu_custom_call.1} parent=1 // pred_fallthru
      _
    %v41 = vld [vmem:[#allocation2] sm:$0xff]
    %v42 = vld [vmem:[#allocation5] sm:$0xff]
    %v43 = vld [vmem:[#allocation5 + $0x8] sm:$0xff]
    %v44 = vld [vmem:[%s2] sm:$0x1]
    %v46 = vlaneseq
    %v47 = vshrl.u32 %v46, 7
    %v48 = vsub.s32 0, %v47
    %v49 = vrot.slane %v44, %v48
    %vm51 = vcmask 130048
    %v53 = vsel %vm51, %v41, 0
    %55 = vmatprep.subr.mxu0 0.0
    %56 = vmatpush1.msra.mxu0 %v42
    %57 = vmatprep.subr.mxu0 0.0
    %58 = vmatpush1.msra.mxu0 %v43
    %59 = vmatprep.subr.mxu0 0.0
    %60 = vmatpush1.msra.mxu0 0.0
    %61 = vmatprep.subr.mxu0 0.0
    %62 = vmatpush1.msra.mxu0 0.0
    %63 = vmatprep.subr.mxu0 0.0
    %64 = vmatpush1.msra.mxu0 0.0
    %65 = vmatprep.subr.mxu0 0.0
    %66 = vmatpush1.msra.mxu0 0.0
    %67 = vmatprep.subr.mxu0 0.0
    %68 = vmatpush1.msra.mxu0 0.0
    %69 = vmatprep.subr.mxu0 0.0
    %70 = vmatpush1.msra.mxu0 0.0
    %71 = vmatprep.subr.mxu0 0.0
    %72 = vmatpush1.msra.mxu0 0.0
    %73 = vmatprep.subr.mxu0 0.0
    %74 = vmatpush1.msra.mxu0 0.0
    %75 = vmatprep.subr.mxu0 0.0
    %76 = vmatpush1.msra.mxu0 0.0
    %77 = vmatprep.subr.mxu0 0.0
    %78 = vmatpush1.msra.mxu0 0.0
    %79 = vmatprep.subr.mxu0 0.0
    %80 = vmatpush1.msra.mxu0 0.0
    %81 = vmatprep.subr.mxu0 0.0
    %82 = vmatpush1.msra.mxu0 0.0
    %83 = vmatprep.subr.mxu0 0.0
    %84 = vmatpush1.msra.mxu0 0.0
    %85 = vmatprep.subr.mxu0 0.0
    %86 = vmatpush1.msra.mxu0 0.0
    %87 = vmatprep.subr.mxu0 0.0
    %88 = vmatpush1.msra.mxu0 0.0
    %89 = vmatprep.subr.mxu0 0.0
    %90 = vmatpush1.msra.mxu0 0.0
    %91 = vmatprep.subr.mxu0 0.0
    %92 = vmatpush1.msra.mxu0 0.0
    %93 = vmatprep.subr.mxu0 0.0
    %94 = vmatpush1.msra.mxu0 0.0
    %95 = vmatprep.subr.mxu0 0.0
    %96 = vmatpush1.msra.mxu0 0.0
    %97 = vmatprep.subr.mxu0 0.0
    %98 = vmatpush1.msra.mxu0 0.0
    %99 = vmatprep.subr.mxu0 0.0
    %100 = vmatpush1.msra.mxu0 0.0
    %101 = vmatprep.subr.mxu0 0.0
    %102 = vmatpush1.msra.mxu0 0.0
    %103 = vmatprep.subr.mxu0 0.0
    %104 = vmatpush1.msra.mxu0 0.0
    %105 = vmatprep.subr.mxu0 0.0
    %106 = vmatpush1.msra.mxu0 0.0
    %107 = vmatprep.subr.mxu0 0.0
    %108 = vmatpush1.msra.mxu0 0.0
    %109 = vmatprep.subr.mxu0 0.0
    %110 = vmatpush1.msra.mxu0 0.0
    %111 = vmatprep.subr.mxu0 0.0
    %112 = vmatpush1.msra.mxu0 0.0
    %113 = vmatprep.subr.mxu0 0.0
    %114 = vmatpush1.msra.mxu0 0.0
    %115 = vmatprep.subr.mxu0 0.0
    %116 = vmatpush1.msra.mxu0 0.0
    %117 = vmatprep.subr.mxu0 0.0
    %118 = vmatpush1.msra.mxu0 0.0
    %119 = vmatprep.mubr.f32.mxu0 0.0
    %120 = vmatmul.mubr.f32.gmra.mrb[0].mxu0 %v53
    %v121 = vpop.f32.mrb[0].mxu0
    %v122 = vadd.f32 %v49, %v121
    %v123 = vpop.f32.mrb[0].mxu0
    %124 = vdwg.mxu0
    %v125 = vmin.f32 %v122, 20.0
    %vm126 = vcmp.gt.f32.partialorder %v122, 20.0
    %v127 = vmul.f32 %v125, 1.442695
    %v128 = vpow.pop %v127
    %v129 = vadd.f32 %v128, 1.0
    %v130 = vlog2.pop %v129
    %v131 = vmul.f32 %v130, 0.6931472
    %v132 = vmul.f32 -0.5, %v128
    %v133 = vadd.f32 %v132, 1.0
    %v134 = vmul.f32 %v133, %v128
    %v135 = vand.u32 2147483647, %v128
    %vm136 = vcmp.lt.f32.partialorder %v135, 0.0004427343
    %v137 = vsel %vm136, %v134, %v131
    %v138 = vsel %vm126, %v122, %v137
    %vm139 = vcmask 261120
    %140 = vst.msk [vmem:[#allocation7] sm:$0xff] %vm139, %v138
    // Predicated region
    $region22: #{tpu_custom_call.1} parent=1 // pred_check
      _
    $region23: #{tpu_custom_call.1} parent=1 // pred_check_branch
      %142 = sbr.rel (0) target = $region25
    $region24: #{tpu_custom_call.1} parent=1 // pred_region
      %s144 = ssub.s32 128, 128
      %145 = vsyncadd [#allocation4], %s144
      %s147 = sshll.u32 [#allocation7], 4
      %s148 = int_to_ptr.vmem [resolvable:$true] %s147
      %150 = dma.vmem_to_hbm [thread:$0]  %s148, 128, %s3, [#allocation4]
    $region25: #{tpu_custom_call.1} parent=1 // pred_fallthru
      _
    // Predicated region
    $region26: #{tpu_custom_call.1} parent=1 // pred_check
      _
    $region27: #{tpu_custom_call.1} parent=1 // pred_check_branch
      %152 = sbr.rel (0) target = $region29
    $region28: #{tpu_custom_call.1} parent=1 // pred_region
      %153 = dma.done [#allocation4], 128
    $region29: #{tpu_custom_call.1} parent=1 // pred_fallthru
      _
    %154 = vsyncpa [#allocation3], 1
    %155 = vsyncpa [#allocation6], 1
    %156 = vsyncpa [#allocation4], 1

</llo_original>
